<compile_context>
chip_gen: v5e
topology: v5e:2x2
jax: 0.10.0
libtpu: 0.0.40
codegen_flags: <defaults>
</compile_context>

<pallas_src>
import jax
import jax.numpy as jnp
from jax import lax
from jax.experimental import pallas as pl
from jax.experimental.pallas import tpu as pltpu


# ----------------------------------------------------------------------------
# Pallas kernels
# ----------------------------------------------------------------------------
def _conv_core(a, w_ref, y_ref, stat_ref):
    """Shared conv + BN-stats epilogue (whole batch, single MXU matmul).

    a:        (N, H, W*Cin) f32 activation slab (prologue already applied).
    w_ref:    (3*W*Cin, W*Cout) bf16 banded weights (dx taps + W zero padding
              folded into the band, dy taps stacked along K).
    y_ref:    (N, H, W*Cout) bf16 conv output (lane-dense).
    stat_ref: (2, W*Cout) f32: row 0 = sum(y), row 1 = sum(y*y), per lane.
    """
    n, h, wc = a.shape
    wc_out = y_ref.shape[-1]

    # Cast exactly once, then build the dy-im2col LHS in registers with zero
    # halo rows per image (no VMEM scratch, no per-tap recasts).
    a_bf = a.astype(jnp.bfloat16)
    zrow = jnp.zeros((n, 1, wc), jnp.bfloat16)
    up = jnp.concatenate([zrow, a_bf[:, : h - 1, :]], axis=1)   # x[h-1, :]
    dn = jnp.concatenate([a_bf[:, 1:, :], zrow], axis=1)        # x[h+1, :]
    lhs = jnp.concatenate([up, a_bf, dn], axis=2).reshape(n * h, 3 * wc)

    # One MXU matmul: (N*H, 3*W*Cin) @ (3*W*Cin, W*Cout), f32 accumulation.
    acc = jnp.dot(lhs, w_ref[...], preferred_element_type=jnp.float32)

    # Lane-dense bf16 intermediate store.
    y_ref[...] = acc.reshape(n, h, wc_out).astype(y_ref.dtype)

    # Fused BatchNorm statistics epilogue on the f32 accumulator (per lane; the
    # fold over W positions within each lane group is done in wrapper glue).
    stat_ref[0:1, :] = jnp.sum(acc, axis=0, keepdims=True)
    stat_ref[1:2, :] = jnp.sum(acc * acc, axis=0, keepdims=True)


def _conv_stats_kernel(x_ref, w_ref, y_ref, stat_ref):
    """conv1: raw f32 input, no fused input affine."""
    _conv_core(x_ref[...].astype(jnp.float32), w_ref, y_ref, stat_ref)


def _bnrelu_conv_stats_kernel(x_ref, w_ref, scale_ref, shift_ref,
                              y_ref, stat_ref):
    """conv2: previous layer's BN affine + ReLU fused into the input prologue."""
    a = jnp.maximum(
        x_ref[...].astype(jnp.float32) * scale_ref[...] + shift_ref[...], 0.0)
    _conv_core(a, w_ref, y_ref, stat_ref)


def _affine_relu_kernel(y_ref, scale_ref, shift_ref, o_ref):
    """Final fused BN affine + ReLU over the whole lane-dense (N, H, W*C) slab."""
    y = y_ref[...].astype(jnp.float32)
    o_ref[...] = jnp.maximum(y * scale_ref[...] + shift_ref[...],
                             0.0).astype(o_ref.dtype)


# ----------------------------------------------------------------------------
# Wrappers
# ----------------------------------------------------------------------------
def _band_weights(w, W):
    """(3, 3, Cin, Cout) HWIO -> (3*W*Cin, W*Cout) banded weights.

    wb[dy*W*Cin + jj*Cin + c, j*Cout + o] = w[dy, dx, c, o] with jj = j + dx - 1;
    out-of-range jj rows are absent (zero), which implements the zero padding
    along W inside the matmul itself.
    """
    kh, kw, cin, cout = w.shape
    j = jnp.arange(W)
    wb = jnp.zeros((kh, W, cin, W, cout), w.dtype)
    for dx in range(kw):
        band = (j[:, None] == (j[None, :] + dx - 1)).astype(w.dtype)  # (jj, j)
        wb = wb + band[None, :, None, :, None] * w[:, dx][:, None, :, None, :]
    return wb.reshape(kh * W * cin, W * cout)


def conv_bn_stats(x, wband, scale_t=None, shift_t=None):
    """Conv (+optional fused input BN-affine+ReLU) + BN-stats epilogue.

    x:      (N, H, W*Cin) activation slab (f32 for conv1, bf16 for conv2).
    wband:  (3*W*Cin, W*Cout) bf16 banded weights.
    scale_t/shift_t: optional (1, 1, W*Cin) f32 per-channel affine (tiled over
                     W), applied with ReLU before the conv.
    Returns y (N, H, W*Cout) bf16 and stats (2, W*Cout) f32.
    """
    N, H, WC_in = x.shape
    K, WC_out = wband.shape
    fused = scale_t is not None

    kernel = _bnrelu_conv_stats_kernel if fused else _conv_stats_kernel
    inputs = (x, wband, scale_t, shift_t) if fused else (x, wband)

    in_specs = [
        pl.BlockSpec((N, H, WC_in), lambda i: (0, 0, 0)),
        pl.BlockSpec((K, WC_out), lambda i: (0, 0)),
    ]
    if fused:
        in_specs += [
            pl.BlockSpec((1, 1, WC_in), lambda i: (0, 0, 0)),
            pl.BlockSpec((1, 1, WC_in), lambda i: (0, 0, 0)),
        ]

    y, stats = pl.pallas_call(
        kernel,
        out_shape=(jax.ShapeDtypeStruct((N, H, WC_out), jnp.bfloat16),
                   jax.ShapeDtypeStruct((2, WC_out), jnp.float32)),
        grid=(1,),   # whole batch in one step: M = N*H feeds the MXU
        in_specs=in_specs,
        out_specs=(pl.BlockSpec((N, H, WC_out), lambda i: (0, 0, 0)),
                   pl.BlockSpec((2, WC_out), lambda i: (0, 0))),
        compiler_params=pltpu.CompilerParams(
            dimension_semantics=("arbitrary",)),
    )(*inputs)
    return y, stats


def affine_relu(y, scale_t, shift_t):
    """Elementwise per-channel affine + ReLU over the whole (N, H, W*C) slab."""
    N, H, WC = y.shape
    return pl.pallas_call(
        _affine_relu_kernel,
        out_shape=jax.ShapeDtypeStruct((N, H, WC), jnp.float32),
        grid=(1,),
        in_specs=[pl.BlockSpec((N, H, WC), lambda i: (0, 0, 0)),
                  pl.BlockSpec((1, 1, WC), lambda i: (0, 0, 0)),
                  pl.BlockSpec((1, 1, WC), lambda i: (0, 0, 0))],
        out_specs=pl.BlockSpec((N, H, WC), lambda i: (0, 0, 0)),
        compiler_params=pltpu.CompilerParams(
            dimension_semantics=("arbitrary",)),
    )(y, scale_t, shift_t)


def _bn_scale_shift(stats, count, gamma, beta, W, cout, eps=1e-5):
    """Fold per-lane sums into per-channel BN scale/shift, tiled to lane layout."""
    s = jnp.sum(stats[0].reshape(W, cout), axis=0)
    s2 = jnp.sum(stats[1].reshape(W, cout), axis=0)
    mean = s / count
    var = jnp.maximum(s2 / count - mean * mean, 0.0)   # biased, training-mode BN
    scale = gamma * lax.rsqrt(var + eps)
    shift = beta - mean * scale
    scale_t = jnp.tile(scale, W).reshape(1, 1, W * cout)
    shift_t = jnp.tile(shift, W).reshape(1, 1, W * cout)
    return scale_t, shift_t


def double_conv_forward(x_nchw, params, eps=1e-5):
    """Equivalent of double_conv.forward (training-mode BN) for NCHW f32 input."""
    N, Cin, H, W = x_nchw.shape
    Cout = params["w1"].shape[-1]
    count = float(N * H * W)

    # NCHW -> NHWC -> merged lane-dense (N, H, W*Cin) layout.
    x = jnp.transpose(x_nchw, (0, 2, 3, 1)).reshape(N, H, W * Cin)

    # Banded, bf16 weights, dy taps stacked along K (built once; conv bias
    # dropped: it cancels exactly under training-mode BN).
    wb1 = _band_weights(params["w1"], W).astype(jnp.bfloat16)
    wb2 = _band_weights(params["w2"], W).astype(jnp.bfloat16)

    # conv1 + fused batch-stats epilogue.
    y1, st1 = conv_bn_stats(x, wb1)
    sc1, sh1 = _bn_scale_shift(st1, count, params["gamma1"], params["beta1"],
                               W, Cout, eps)

    # BN1 affine + ReLU fused into conv2's prologue; conv2 + stats epilogue.
    y2, st2 = conv_bn_stats(y1, wb2, sc1, sh1)
    sc2, sh2 = _bn_scale_shift(st2, count, params["gamma2"], params["beta2"],
                               W, Cout, eps)

    # Final BN2 affine + ReLU (single lane-dense elementwise pass).
    out = affine_relu(y2, sc2, sh2)

    # (N, H, W*Cout) -> NHWC -> NCHW (tiny output transpose; see TODO above).
    return jnp.transpose(out.reshape(N, H, W, Cout), (0, 3, 1, 2))


# ----------------------------------------------------------------------------
# Pure-JAX references (for correctness checks)
# ----------------------------------------------------------------------------
def _ref_forward(x_nchw, params, eps=1e-5):
    """Faithful f32 reference of the PyTorch module (training-mode BN)."""
    def conv(x, w, b):
        y = lax.conv_general_dilated(
            x, w, window_strides=(1, 1), padding="SAME",
            dimension_numbers=("NHWC", "HWIO", "NHWC"),
            precision=lax.Precision.HIGHEST)
        return y + b[None, None, None, :]

    def bn_relu(y, gamma, beta):
        mean = jnp.mean(y, axis=(0, 1, 2))
        var = jnp.var(y, axis=(0, 1, 2))
        yhat = (y - mean) / jnp.sqrt(var + eps)
        return jnp.maximum(yhat * gamma + beta, 0.0)

    x = jnp.transpose(x_nchw, (0, 2, 3, 1))
    a1 = bn_relu(conv(x, params["w1"], params["b1"]),
                 params["gamma1"], params["beta1"])
    a2 = bn_relu(conv(a1, params["w2"], params["b2"]),
                 params["gamma2"], params["beta2"])
    return jnp.transpose(a2, (0, 3, 1, 2))


def _ref_mirror(x_nchw, params, eps=1e-5):
    """Reference that mirrors the kernel's quantization points exactly:
    bf16 matmul operands, f32 accumulation & stats, bf16 intermediate storage,
    conv bias dropped (cancels under training-mode BN)."""
    def conv_nobias(x, w):
        xq = x.astype(jnp.bfloat16).astype(jnp.float32)
        wq = w.astype(jnp.bfloat16).astype(jnp.float32)
        return lax.conv_general_dilated(
            xq, wq, window_strides=(1, 1), padding="SAME",
            dimension_numbers=("NHWC", "HWIO", "NHWC"),
            precision=lax.Precision.HIGHEST)

    def bn_scale_shift(y, gamma, beta, count):
        s = jnp.sum(y, axis=(0, 1, 2))
        s2 = jnp.sum(y * y, axis=(0, 1, 2))
        mean = s / count
        var = jnp.maximum(s2 / count - mean * mean, 0.0)
        scale = gamma * lax.rsqrt(var + eps)
        shift = beta - mean * scale
        return scale, shift

    N, _, H, W = x_nchw.shape
    count = float(N * H * W)
    x = jnp.transpose(x_nchw, (0, 2, 3, 1))

    y1 = conv_nobias(x, params["w1"])
    s1, b1 = bn_scale_shift(y1, params["gamma1"], params["beta1"], count)
    y1q = y1.astype(jnp.bfloat16).astype(jnp.float32)          # bf16 intermediate
    a1 = jnp.maximum(y1q * s1 + b1, 0.0)

    y2 = conv_nobias(a1, params["w2"])
    s2, b2 = bn_scale_shift(y2, params["gamma2"], params["beta2"], count)
    y2q = y2.astype(jnp.bfloat16).astype(jnp.float32)          # bf16 intermediate
    out = jnp.maximum(y2q * s2 + b2, 0.0)
    return jnp.transpose(out, (0, 3, 1, 2))


# ----------------------------------------------------------------------------
# Parameter init (deterministic, PyTorch-like Conv2d uniform bounds)
# ----------------------------------------------------------------------------
def init_params(key, in_ch, out_ch):
    k1, k2, k3, k4 = jax.random.split(key, 4)
    bound1 = 1.0 / jnp.sqrt(in_ch * 9.0)
    bound2 = 1.0 / jnp.sqrt(out_ch * 9.0)
    return {
        "w1": jax.random.uniform(k1, (3, 3, in_ch, out_ch), jnp.float32,
                                 -bound1, bound1),
        "b1": jax.random.uniform(k2, (out_ch,), jnp.float32, -bound1, bound1),
        "gamma1": jnp.ones((out_ch,), jnp.float32),
        "beta1": jnp.zeros((out_ch,), jnp.float32),
        "w2": jax.random.uniform(k3, (3, 3, out_ch, out_ch), jnp.float32,
                                 -bound2, bound2),
        "b2": jax.random.uniform(k4, (out_ch,), jnp.float32, -bound2, bound2),
        "gamma2": jnp.ones((out_ch,), jnp.float32),
        "beta2": jnp.zeros((out_ch,), jnp.float32),
    }


if __name__ == "__main__":
    key = jax.random.PRNGKey(0)
    kx, kp = jax.random.split(key)

    N, in_ch, out_ch, H, W = 2, 4, 8, 16, 16
    x = jax.random.normal(kx, (N, in_ch, H, W), jnp.float32)   # NCHW like PyTorch
    params = init_params(kp, in_ch, out_ch)

    fwd = jax.jit(double_conv_forward)
    out = jax.block_until_ready(fwd(x, params))

    ref_mirror = jax.block_until_ready(_ref_mirror(x, params))
    ref_f32 = jax.block_until_ready(_ref_forward(x, params))

    assert out.shape == (N, out_ch, H, W), out.shape
    # Strict check against a reference with identical quantization points.
    err_m = float(jnp.max(jnp.abs(out - ref_mirror)))
    assert jnp.allclose(out, ref_mirror, atol=1e-2, rtol=1e-2), err_m
    # Loose check against the full-f32 (bias-keeping) PyTorch-equivalent path.
    err_f = float(jnp.max(jnp.abs(out - ref_f32)))
    assert jnp.allclose(out, ref_f32, atol=1e-1, rtol=1e-1), err_f

    print("KERNEL_OK")
</pallas_src>

<mosaic_0001>
module attributes {stable_mosaic.version = 11 : i64} {
  func.func @_conv_stats_kernel(%arg0: i32, %arg1: memref<2x16x64xf32, #tpu.memory_space<vmem>>, %arg2: memref<192x128xbf16, #tpu.memory_space<vmem>>, %arg3: memref<2x16x128xbf16, #tpu.memory_space<vmem>>, %arg4: memref<2x128xf32, #tpu.memory_space<vmem>>) attributes {dimension_semantics = [#tpu.dimension_semantics<arbitrary>], iteration_bounds = array<i64: 1>, scalar_prefetch = 0 : i64, scratch_operands = 0 : i64, tpu.core_type = #tpu.core_type<tc>, window_params = [{pipeline_mode = #tpu.pipeline_mode<synchronous>, transform_indices = @transform_0, window_bounds = array<i64: 2, 16, 64>}, {pipeline_mode = #tpu.pipeline_mode<synchronous>, transform_indices = @transform_1, window_bounds = array<i64: 192, 128>}, {pipeline_mode = #tpu.pipeline_mode<synchronous>, transform_indices = @transform_2, window_bounds = array<i64: 2, 16, 128>}, {pipeline_mode = #tpu.pipeline_mode<synchronous>, transform_indices = @transform_3, window_bounds = array<i64: 2, 128>}]} {
    %c0 = arith.constant 0 : index
    %c0_0 = arith.constant 0 : index
    %c0_1 = arith.constant 0 : index
    %0 = vector.load %arg1[%c0, %c0_0, %c0_1] : memref<2x16x64xf32, #tpu.memory_space<vmem>>, vector<2x16x64xf32>
    %1 = arith.truncf %0 : vector<2x16x64xf32> to vector<2x16x64xbf16>
    %cst = arith.constant 0.000000e+00 : bf16
    %2 = vector.broadcast %cst : bf16 to vector<2x1x64xbf16>
    %3 = vector.extract_strided_slice %1 {offsets = [0, 0, 0], sizes = [2, 15, 64], strides = [1, 1, 1]} : vector<2x16x64xbf16> to vector<2x15x64xbf16>
    %4 = tpu.concatenate %2, %3 in 1 : vector<2x1x64xbf16>, vector<2x15x64xbf16> -> vector<2x16x64xbf16>
    %5 = vector.extract_strided_slice %1 {offsets = [0, 1, 0], sizes = [2, 15, 64], strides = [1, 1, 1]} : vector<2x16x64xbf16> to vector<2x15x64xbf16>
    %6 = tpu.concatenate %5, %2 in 1 : vector<2x15x64xbf16>, vector<2x1x64xbf16> -> vector<2x16x64xbf16>
    %7 = tpu.concatenate %4, %1, %6 in 2 : vector<2x16x64xbf16>, vector<2x16x64xbf16>, vector<2x16x64xbf16> -> vector<2x16x192xbf16>
    %8 = vector.shape_cast %7 : vector<2x16x192xbf16> to vector<32x192xbf16>
    %c0_2 = arith.constant 0 : index
    %c0_3 = arith.constant 0 : index
    %9 = vector.load %arg2[%c0_2, %c0_3] : memref<192x128xbf16, #tpu.memory_space<vmem>>, vector<192x128xbf16>
    %cst_4 = arith.constant dense<0.000000e+00> : vector<32x128xf32>
    %10 = tpu.matmul %8, %9, %cst_4 {dimension_numbers = #tpu.dot_dimension_numbers<[1], [0], [0], [1], [0, 0, 1, 1], [], []>} : vector<32x192xbf16>, vector<192x128xbf16>, vector<32x128xf32> -> vector<32x128xf32>
    %11 = vector.shape_cast %10 : vector<32x128xf32> to vector<2x16x128xf32>
    %12 = arith.truncf %11 : vector<2x16x128xf32> to vector<2x16x128xbf16>
    %c0_5 = arith.constant 0 : index
    %c0_6 = arith.constant 0 : index
    %c0_7 = arith.constant 0 : index
    %13 = vector.load %arg3[%c0_5, %c0_6, %c0_7] : memref<2x16x128xbf16, #tpu.memory_space<vmem>>, vector<2x16x128xbf16>
    tpu.vector_store %arg3[%c0_5, %c0_6, %c0_7], %12 {strides = array<i32>} : memref<2x16x128xbf16, #tpu.memory_space<vmem>>, vector<2x16x128xbf16>,
    %cst_8 = arith.constant dense<0.000000e+00> : vector<128xf32>
    %14 = vector.multi_reduction <add>, %10, %cst_8 [0] : vector<32x128xf32> to vector<128xf32>
    %15 = vector.shape_cast %14 : vector<128xf32> to vector<1x128xf32>
    %c0_9 = arith.constant 0 : index
    %c0_10 = arith.constant 0 : index
    %16 = vector.load %arg4[%c0_9, %c0_10] : memref<2x128xf32, #tpu.memory_space<vmem>>, vector<1x128xf32>
    tpu.vector_store %arg4[%c0_9, %c0_10], %15 {strides = array<i32>} : memref<2x128xf32, #tpu.memory_space<vmem>>, vector<1x128xf32>,
    %17 = arith.mulf %10, %10 : vector<32x128xf32>
    %cst_11 = arith.constant dense<0.000000e+00> : vector<128xf32>
    %18 = vector.multi_reduction <add>, %17, %cst_11 [0] : vector<32x128xf32> to vector<128xf32>
    %19 = vector.shape_cast %18 : vector<128xf32> to vector<1x128xf32>
    %c1 = arith.constant 1 : index
    %c0_12 = arith.constant 0 : index
    %20 = vector.load %arg4[%c1, %c0_12] : memref<2x128xf32, #tpu.memory_space<vmem>>, vector<1x128xf32>
    tpu.vector_store %arg4[%c1, %c0_12], %19 {strides = array<i32>} : memref<2x128xf32, #tpu.memory_space<vmem>>, vector<1x128xf32>,
    return
  }
  func.func @transform_0(%arg0: i32) -> (i32, i32, i32) {
    %c0_i32 = arith.constant 0 : i32
    %c0_i32_0 = arith.constant 0 : i32
    %c0_i32_1 = arith.constant 0 : i32
    %c0_i32_2 = arith.constant 0 : i32
    return %c0_i32, %c0_i32_0, %c0_i32_1 : i32, i32, i32
  }
  func.func @transform_1(%arg0: i32) -> (i32, i32) {
    %c0_i32 = arith.constant 0 : i32
    %c0_i32_0 = arith.constant 0 : i32
    %c0_i32_1 = arith.constant 0 : i32
    return %c0_i32, %c0_i32_0 : i32, i32
  }
  func.func @transform_2(%arg0: i32) -> (i32, i32, i32) {
    %c0_i32 = arith.constant 0 : i32
    %c0_i32_0 = arith.constant 0 : i32
    %c0_i32_1 = arith.constant 0 : i32
    %c0_i32_2 = arith.constant 0 : i32
    return %c0_i32, %c0_i32_0, %c0_i32_1 : i32, i32, i32
  }
  func.func @transform_3(%arg0: i32) -> (i32, i32) {
    %c0_i32 = arith.constant 0 : i32
    %c0_i32_0 = arith.constant 0 : i32
    %c0_i32_1 = arith.constant 0 : i32
    return %c0_i32, %c0_i32_0 : i32, i32
  }
}

module attributes {stable_mosaic.version = 11 : i64} {
  func.func @_bnrelu_conv_stats_kernel(%arg0: i32, %arg1: memref<2x16x128xbf16, #tpu.memory_space<vmem>>, %arg2: memref<384x128xbf16, #tpu.memory_space<vmem>>, %arg3: memref<1x1x128xf32, #tpu.memory_space<vmem>>, %arg4: memref<1x1x128xf32, #tpu.memory_space<vmem>>, %arg5: memref<2x16x128xbf16, #tpu.memory_space<vmem>>, %arg6: memref<2x128xf32, #tpu.memory_space<vmem>>) attributes {dimension_semantics = [#tpu.dimension_semantics<arbitrary>], iteration_bounds = array<i64: 1>, scalar_prefetch = 0 : i64, scratch_operands = 0 : i64, tpu.core_type = #tpu.core_type<tc>, window_params = [{pipeline_mode = #tpu.pipeline_mode<synchronous>, transform_indices = @transform_0, window_bounds = array<i64: 2, 16, 128>}, {pipeline_mode = #tpu.pipeline_mode<synchronous>, transform_indices = @transform_1, window_bounds = array<i64: 384, 128>}, {pipeline_mode = #tpu.pipeline_mode<synchronous>, transform_indices = @transform_2, window_bounds = array<i64: 1, 1, 128>}, {pipeline_mode = #tpu.pipeline_mode<synchronous>, transform_indices = @transform_3, window_bounds = array<i64: 1, 1, 128>}, {pipeline_mode = #tpu.pipeline_mode<synchronous>, transform_indices = @transform_4, window_bounds = array<i64: 2, 16, 128>}, {pipeline_mode = #tpu.pipeline_mode<synchronous>, transform_indices = @transform_5, window_bounds = array<i64: 2, 128>}]} {
    %c0 = arith.constant 0 : index
    %c0_0 = arith.constant 0 : index
    %c0_1 = arith.constant 0 : index
    %0 = vector.load %arg1[%c0, %c0_0, %c0_1] : memref<2x16x128xbf16, #tpu.memory_space<vmem>>, vector<2x16x128xbf16>
    %1 = arith.extf %0 : vector<2x16x128xbf16> to vector<2x16x128xf32>
    %c0_2 = arith.constant 0 : index
    %c0_3 = arith.constant 0 : index
    %c0_4 = arith.constant 0 : index
    %2 = vector.load %arg3[%c0_2, %c0_3, %c0_4] : memref<1x1x128xf32, #tpu.memory_space<vmem>>, vector<1x1x128xf32>
    %3 = vector.broadcast %2 : vector<1x1x128xf32> to vector<2x16x128xf32>
    %4 = arith.mulf %1, %3 : vector<2x16x128xf32>
    %c0_5 = arith.constant 0 : index
    %c0_6 = arith.constant 0 : index
    %c0_7 = arith.constant 0 : index
    %5 = vector.load %arg4[%c0_5, %c0_6, %c0_7] : memref<1x1x128xf32, #tpu.memory_space<vmem>>, vector<1x1x128xf32>
    %6 = vector.broadcast %5 : vector<1x1x128xf32> to vector<2x16x128xf32>
    %7 = arith.addf %4, %6 : vector<2x16x128xf32>
    %cst = arith.constant 0.000000e+00 : f32
    %8 = vector.broadcast %cst : f32 to vector<2x16x128xf32>
    %9 = arith.maximumf %7, %8 : vector<2x16x128xf32>
    %10 = arith.truncf %9 : vector<2x16x128xf32> to vector<2x16x128xbf16>
    %cst_8 = arith.constant 0.000000e+00 : bf16
    %11 = vector.broadcast %cst_8 : bf16 to vector<2x1x128xbf16>
    %12 = vector.extract_strided_slice %10 {offsets = [0, 0, 0], sizes = [2, 15, 128], strides = [1, 1, 1]} : vector<2x16x128xbf16> to vector<2x15x128xbf16>
    %13 = tpu.concatenate %11, %12 in 1 : vector<2x1x128xbf16>, vector<2x15x128xbf16> -> vector<2x16x128xbf16>
    %14 = vector.extract_strided_slice %10 {offsets = [0, 1, 0], sizes = [2, 15, 128], strides = [1, 1, 1]} : vector<2x16x128xbf16> to vector<2x15x128xbf16>
    %15 = tpu.concatenate %14, %11 in 1 : vector<2x15x128xbf16>, vector<2x1x128xbf16> -> vector<2x16x128xbf16>
    %16 = tpu.concatenate %13, %10, %15 in 2 : vector<2x16x128xbf16>, vector<2x16x128xbf16>, vector<2x16x128xbf16> -> vector<2x16x384xbf16>
    %17 = vector.shape_cast %16 : vector<2x16x384xbf16> to vector<32x384xbf16>
    %c0_9 = arith.constant 0 : index
    %c0_10 = arith.constant 0 : index
    %18 = vector.load %arg2[%c0_9, %c0_10] : memref<384x128xbf16, #tpu.memory_space<vmem>>, vector<384x128xbf16>
    %cst_11 = arith.constant dense<0.000000e+00> : vector<32x128xf32>
    %19 = tpu.matmul %17, %18, %cst_11 {dimension_numbers = #tpu.dot_dimension_numbers<[1], [0], [0], [1], [0, 0, 1, 1], [], []>} : vector<32x384xbf16>, vector<384x128xbf16>, vector<32x128xf32> -> vector<32x128xf32>
    %20 = vector.shape_cast %19 : vector<32x128xf32> to vector<2x16x128xf32>
    %21 = arith.truncf %20 : vector<2x16x128xf32> to vector<2x16x128xbf16>
    %c0_12 = arith.constant 0 : index
    %c0_13 = arith.constant 0 : index
    %c0_14 = arith.constant 0 : index
    %22 = vector.load %arg5[%c0_12, %c0_13, %c0_14] : memref<2x16x128xbf16, #tpu.memory_space<vmem>>, vector<2x16x128xbf16>
    tpu.vector_store %arg5[%c0_12, %c0_13, %c0_14], %21 {strides = array<i32>} : memref<2x16x128xbf16, #tpu.memory_space<vmem>>, vector<2x16x128xbf16>,
    %cst_15 = arith.constant dense<0.000000e+00> : vector<128xf32>
    %23 = vector.multi_reduction <add>, %19, %cst_15 [0] : vector<32x128xf32> to vector<128xf32>
    %24 = vector.shape_cast %23 : vector<128xf32> to vector<1x128xf32>
    %c0_16 = arith.constant 0 : index
    %c0_17 = arith.constant 0 : index
    %25 = vector.load %arg6[%c0_16, %c0_17] : memref<2x128xf32, #tpu.memory_space<vmem>>, vector<1x128xf32>
    tpu.vector_store %arg6[%c0_16, %c0_17], %24 {strides = array<i32>} : memref<2x128xf32, #tpu.memory_space<vmem>>, vector<1x128xf32>,
    %26 = arith.mulf %19, %19 : vector<32x128xf32>
    %cst_18 = arith.constant dense<0.000000e+00> : vector<128xf32>
    %27 = vector.multi_reduction <add>, %26, %cst_18 [0] : vector<32x128xf32> to vector<128xf32>
    %28 = vector.shape_cast %27 : vector<128xf32> to vector<1x128xf32>
    %c1 = arith.constant 1 : index
    %c0_19 = arith.constant 0 : index
    %29 = vector.load %arg6[%c1, %c0_19] : memref<2x128xf32, #tpu.memory_space<vmem>>, vector<1x128xf32>
    tpu.vector_store %arg6[%c1, %c0_19], %28 {strides = array<i32>} : memref<2x128xf32, #tpu.memory_space<vmem>>, vector<1x128xf32>,
    return
  }
  func.func @transform_0(%arg0: i32) -> (i32, i32, i32) {
    %c0_i32 = arith.constant 0 : i32
    %c0_i32_0 = arith.constant 0 : i32
    %c0_i32_1 = arith.constant 0 : i32
    %c0_i32_2 = arith.constant 0 : i32
    return %c0_i32, %c0_i32_0, %c0_i32_1 : i32, i32, i32
  }
  func.func @transform_1(%arg0: i32) -> (i32, i32) {
    %c0_i32 = arith.constant 0 : i32
    %c0_i32_0 = arith.constant 0 : i32
    %c0_i32_1 = arith.constant 0 : i32
    return %c0_i32, %c0_i32_0 : i32, i32
  }
  func.func @transform_2(%arg0: i32) -> (i32, i32, i32) {
    %c0_i32 = arith.constant 0 : i32
    %c0_i32_0 = arith.constant 0 : i32
    %c0_i32_1 = arith.constant 0 : i32
    %c0_i32_2 = arith.constant 0 : i32
    return %c0_i32, %c0_i32_0, %c0_i32_1 : i32, i32, i32
  }
  func.func @transform_3(%arg0: i32) -> (i32, i32, i32) {
    %c0_i32 = arith.constant 0 : i32
    %c0_i32_0 = arith.constant 0 : i32
    %c0_i32_1 = arith.constant 0 : i32
    %c0_i32_2 = arith.constant 0 : i32
    return %c0_i32, %c0_i32_0, %c0_i32_1 : i32, i32, i32
  }
  func.func @transform_4(%arg0: i32) -> (i32, i32, i32) {
    %c0_i32 = arith.constant 0 : i32
    %c0_i32_0 = arith.constant 0 : i32
    %c0_i32_1 = arith.constant 0 : i32
    %c0_i32_2 = arith.constant 0 : i32
    return %c0_i32, %c0_i32_0, %c0_i32_1 : i32, i32, i32
  }
  func.func @transform_5(%arg0: i32) -> (i32, i32) {
    %c0_i32 = arith.constant 0 : i32
    %c0_i32_0 = arith.constant 0 : i32
    %c0_i32_1 = arith.constant 0 : i32
    return %c0_i32, %c0_i32_0 : i32, i32
  }
}

module attributes {stable_mosaic.version = 11 : i64} {
  func.func @_affine_relu_kernel(%arg0: i32, %arg1: memref<2x16x128xbf16, #tpu.memory_space<vmem>>, %arg2: memref<1x1x128xf32, #tpu.memory_space<vmem>>, %arg3: memref<1x1x128xf32, #tpu.memory_space<vmem>>, %arg4: memref<2x16x128xf32, #tpu.memory_space<vmem>>) attributes {dimension_semantics = [#tpu.dimension_semantics<arbitrary>], iteration_bounds = array<i64: 1>, scalar_prefetch = 0 : i64, scratch_operands = 0 : i64, tpu.core_type = #tpu.core_type<tc>, window_params = [{pipeline_mode = #tpu.pipeline_mode<synchronous>, transform_indices = @transform_0, window_bounds = array<i64: 2, 16, 128>}, {pipeline_mode = #tpu.pipeline_mode<synchronous>, transform_indices = @transform_1, window_bounds = array<i64: 1, 1, 128>}, {pipeline_mode = #tpu.pipeline_mode<synchronous>, transform_indices = @transform_2, window_bounds = array<i64: 1, 1, 128>}, {pipeline_mode = #tpu.pipeline_mode<synchronous>, transform_indices = @transform_3, window_bounds = array<i64: 2, 16, 128>}]} {
    %c0 = arith.constant 0 : index
    %c0_0 = arith.constant 0 : index
    %c0_1 = arith.constant 0 : index
    %0 = vector.load %arg1[%c0, %c0_0, %c0_1] : memref<2x16x128xbf16, #tpu.memory_space<vmem>>, vector<2x16x128xbf16>
    %1 = arith.extf %0 : vector<2x16x128xbf16> to vector<2x16x128xf32>
    %c0_2 = arith.constant 0 : index
    %c0_3 = arith.constant 0 : index
    %c0_4 = arith.constant 0 : index
    %2 = vector.load %arg2[%c0_2, %c0_3, %c0_4] : memref<1x1x128xf32, #tpu.memory_space<vmem>>, vector<1x1x128xf32>
    %3 = vector.broadcast %2 : vector<1x1x128xf32> to vector<2x16x128xf32>
    %4 = arith.mulf %1, %3 : vector<2x16x128xf32>
    %c0_5 = arith.constant 0 : index
    %c0_6 = arith.constant 0 : index
    %c0_7 = arith.constant 0 : index
    %5 = vector.load %arg3[%c0_5, %c0_6, %c0_7] : memref<1x1x128xf32, #tpu.memory_space<vmem>>, vector<1x1x128xf32>
    %6 = vector.broadcast %5 : vector<1x1x128xf32> to vector<2x16x128xf32>
    %7 = arith.addf %4, %6 : vector<2x16x128xf32>
    %cst = arith.constant 0.000000e+00 : f32
    %8 = vector.broadcast %cst : f32 to vector<2x16x128xf32>
    %9 = arith.maximumf %7, %8 : vector<2x16x128xf32>
    %c0_8 = arith.constant 0 : index
    %c0_9 = arith.constant 0 : index
    %c0_10 = arith.constant 0 : index
    %10 = vector.load %arg4[%c0_8, %c0_9, %c0_10] : memref<2x16x128xf32, #tpu.memory_space<vmem>>, vector<2x16x128xf32>
    tpu.vector_store %arg4[%c0_8, %c0_9, %c0_10], %9 {strides = array<i32>} : memref<2x16x128xf32, #tpu.memory_space<vmem>>, vector<2x16x128xf32>,
    return
  }
  func.func @transform_0(%arg0: i32) -> (i32, i32, i32) {
    %c0_i32 = arith.constant 0 : i32
    %c0_i32_0 = arith.constant 0 : i32
    %c0_i32_1 = arith.constant 0 : i32
    %c0_i32_2 = arith.constant 0 : i32
    return %c0_i32, %c0_i32_0, %c0_i32_1 : i32, i32, i32
  }
  func.func @transform_1(%arg0: i32) -> (i32, i32, i32) {
    %c0_i32 = arith.constant 0 : i32
    %c0_i32_0 = arith.constant 0 : i32
    %c0_i32_1 = arith.constant 0 : i32
    %c0_i32_2 = arith.constant 0 : i32
    return %c0_i32, %c0_i32_0, %c0_i32_1 : i32, i32, i32
  }
  func.func @transform_2(%arg0: i32) -> (i32, i32, i32) {
    %c0_i32 = arith.constant 0 : i32
    %c0_i32_0 = arith.constant 0 : i32
    %c0_i32_1 = arith.constant 0 : i32
    %c0_i32_2 = arith.constant 0 : i32
    return %c0_i32, %c0_i32_0, %c0_i32_1 : i32, i32, i32
  }
  func.func @transform_3(%arg0: i32) -> (i32, i32, i32) {
    %c0_i32 = arith.constant 0 : i32
    %c0_i32_0 = arith.constant 0 : i32
    %c0_i32_1 = arith.constant 0 : i32
    %c0_i32_2 = arith.constant 0 : i32
    return %c0_i32, %c0_i32_0, %c0_i32_1 : i32, i32, i32
  }
}

</mosaic_0001>

<llo_original>
// kernel: squeeze.16
$region0: #{squeeze.16}
  %s0 = inlined_call_operand.vmem [shape: f32[128], index: 0, kind: input, shape index: {}]
  %s1 = inlined_call_operand.vmem [shape: f32[16,8], index: 1, kind: output, shape index: {}]
  $region1: #{squeeze.16} parent=0
    #allocation0 [shape = 'u8[4096]{0}', space=vmem, size = 0x1000, scoped, tag = 'scoped mem for input reshape']
    %s3 = ssub.s32 2, 1
    %v4 = vld [vmem:[%s0] sm:%s3]
    %5 = vst [vmem:[#allocation0] sm:%s3] %v4
    %v6 = vld [vmem:[#allocation0] sm:$0x1]
    %vm7 = vcmask 64512
    %8 = vst.msk [vmem:[%s1] sm:$0x1] %vm7, %v6
    %v9 = vld [vmem:[#allocation0] sm:$0x1]
    %10 = vrot.lane.b32.xlu0 %v9, 120
    %v11 = vpop.permute.xlu0 %10
    %vm12 = vcmask 64512
    %s13 = scalar_lea.vmem %s1, 1
    %14 = vst.msk [vmem:[%s13] sm:$0x1] %vm12, %v11
    %v15 = vld [vmem:[#allocation0] sm:$0x1]
    %16 = vrot.lane.b32.xlu0 %v15, 112
    %v17 = vpop.permute.xlu0 %16
    %vm18 = vcmask 64512
    %s19 = scalar_lea.vmem %s1, 2
    %20 = vst.msk [vmem:[%s19] sm:$0x1] %vm18, %v17
    %v21 = vld [vmem:[#allocation0] sm:$0x1]
    %22 = vrot.lane.b32.xlu0 %v21, 104
    %v23 = vpop.permute.xlu0 %22
    %vm24 = vcmask 64512
    %s25 = scalar_lea.vmem %s1, 3
    %26 = vst.msk [vmem:[%s25] sm:$0x1] %vm24, %v23
    %v27 = vld [vmem:[#allocation0] sm:$0x1]
    %28 = vrot.lane.b32.xlu0 %v27, 96
    %v29 = vpop.permute.xlu0 %28
    %vm30 = vcmask 64512
    %s31 = scalar_lea.vmem %s1, 4
    %32 = vst.msk [vmem:[%s31] sm:$0x1] %vm30, %v29
    %v33 = vld [vmem:[#allocation0] sm:$0x1]
    %34 = vrot.lane.b32.xlu0 %v33, 88
    %v35 = vpop.permute.xlu0 %34
    %vm36 = vcmask 64512
    %s37 = scalar_lea.vmem %s1, 5
    %38 = vst.msk [vmem:[%s37] sm:$0x1] %vm36, %v35
    %v39 = vld [vmem:[#allocation0] sm:$0x1]
    %40 = vrot.lane.b32.xlu0 %v39, 80
    %v41 = vpop.permute.xlu0 %40
    %vm42 = vcmask 64512
    %s43 = scalar_lea.vmem %s1, 6
    %44 = vst.msk [vmem:[%s43] sm:$0x1] %vm42, %v41
    %v45 = vld [vmem:[#allocation0] sm:$0x1]
    %46 = vrot.lane.b32.xlu0 %v45, 72
    %v47 = vpop.permute.xlu0 %46
    %vm48 = vcmask 64512
    %s49 = scalar_lea.vmem %s1, 7
    %50 = vst.msk [vmem:[%s49] sm:$0x1] %vm48, %v47
    %v51 = vld [vmem:[#allocation0] sm:$0x1]
    %52 = vrot.lane.b32.xlu0 %v51, 64
    %v53 = vpop.permute.xlu0 %52
    %vm54 = vcmask 64512
    %s55 = scalar_lea.vmem %s1, 8
    %56 = vst.msk [vmem:[%s55] sm:$0x1] %vm54, %v53
    %v57 = vld [vmem:[#allocation0] sm:$0x1]
    %58 = vrot.lane.b32.xlu0 %v57, 56
    %v59 = vpop.permute.xlu0 %58
    %vm60 = vcmask 64512
    %s61 = scalar_lea.vmem %s1, 9
    %62 = vst.msk [vmem:[%s61] sm:$0x1] %vm60, %v59
    %v63 = vld [vmem:[#allocation0] sm:$0x1]
    %64 = vrot.lane.b32.xlu0 %v63, 48
    %v65 = vpop.permute.xlu0 %64
    %vm66 = vcmask 64512
    %s67 = scalar_lea.vmem %s1, 10
    %68 = vst.msk [vmem:[%s67] sm:$0x1] %vm66, %v65
    %v69 = vld [vmem:[#allocation0] sm:$0x1]
    %70 = vrot.lane.b32.xlu0 %v69, 40
    %v71 = vpop.permute.xlu0 %70
    %vm72 = vcmask 64512
    %s73 = scalar_lea.vmem %s1, 11
    %74 = vst.msk [vmem:[%s73] sm:$0x1] %vm72, %v71
    %v75 = vld [vmem:[#allocation0] sm:$0x1]
    %76 = vrot.lane.b32.xlu0 %v75, 32
    %v77 = vpop.permute.xlu0 %76
    %vm78 = vcmask 64512
    %s79 = scalar_lea.vmem %s1, 12
    %80 = vst.msk [vmem:[%s79] sm:$0x1] %vm78, %v77
    %v81 = vld [vmem:[#allocation0] sm:$0x1]
    %82 = vrot.lane.b32.xlu0 %v81, 24
    %v83 = vpop.permute.xlu0 %82
    %vm84 = vcmask 64512
    %s85 = scalar_lea.vmem %s1, 13
    %86 = vst.msk [vmem:[%s85] sm:$0x1] %vm84, %v83
    %v87 = vld [vmem:[#allocation0] sm:$0x1]
    %88 = vrot.lane.b32.xlu0 %v87, 16
    %v89 = vpop.permute.xlu0 %88
    %vm90 = vcmask 64512
    %s91 = scalar_lea.vmem %s1, 14
    %92 = vst.msk [vmem:[%s91] sm:$0x1] %vm90, %v89
    %v93 = vld [vmem:[#allocation0] sm:$0x1]
    %94 = vrot.lane.b32.xlu0 %v93, 8
    %v95 = vpop.permute.xlu0 %94
    %vm96 = vcmask 64512
    %s97 = scalar_lea.vmem %s1, 15
    %98 = vst.msk [vmem:[%s97] sm:$0x1] %vm96, %v95

// kernel: tile.28
$region0: #{tile.28}
  #allocation0 [shape = 's32[1]{0}', space=sflag, size = 0x4, scoped, tag = 'scoped memory for tile.28']
  %s0 = inlined_call_operand.vmem [shape: f32[8], index: 0, kind: input, shape index: {}]
  %s1 = inlined_call_operand.vmem [shape: f32[16,8], index: 1, kind: output, shape index: {}]
  // Predicated region
  $region2: #{tile.28} parent=0 // pred_check
    _
  $region3: #{tile.28} parent=0 // pred_check_branch
    %3 = sbr.rel (0) target = $region5
  $region4: #{tile.28} parent=0 // pred_region
    _
  $region5: #{tile.28} parent=0 // pred_fallthru
    _
  %v4 = vld [vmem:[%s0] ss:$0 sm:$0xff]
  %5 = vst [vmem:[%s1] sm:$0xff] %v4
  %s6 = scalar_lea.vmem %s1, 8
  %7 = vst [vmem:[%s6] sm:$0xff] %v4

// kernel: tile.29
$region0: #{tile.29}
  %s0 = inlined_call_operand.vmem [shape: f32[16,8], index: 0, kind: input, shape index: {}]
  %s1 = inlined_call_operand.vmem [shape: f32[1,1,128], index: 1, kind: output, shape index: {}]
  $region1: #{tile.29} parent=0
    #allocation0 [shape = 'u8[4096]{0}', space=vmem, size = 0x1000, scoped, tag = 'scoped mem for output reshape']
    %v2 = vld [vmem:[%s0] sm:$0x1]
    %vm3 = vcmask 64512
    %4 = vst.msk [vmem:[#allocation0] sm:$0x1] %vm3, %v2
    %s5 = scalar_lea.vmem %s0, 15
    %v6 = vld [vmem:[%s5] sm:$0x1]
    %7 = vrot.lane.b32.xlu0 %v6, 120
    %v8 = vpop.permute.xlu0 %7
    %vm9 = vcmask 1048512
    %10 = vst.msk [vmem:[#allocation0] sm:$0x1] %vm9, %v8
    %s11 = scalar_lea.vmem %s0, 14
    %v12 = vld [vmem:[%s11] sm:$0x1]
    %13 = vrot.lane.b32.xlu0 %v12, 112
    %v14 = vpop.permute.xlu0 %13
    %vm15 = vcmask 982912
    %16 = vst.msk [vmem:[#allocation0] sm:$0x1] %vm15, %v14
    %s17 = scalar_lea.vmem %s0, 13
    %v18 = vld [vmem:[%s17] sm:$0x1]
    %19 = vrot.lane.b32.xlu0 %v18, 104
    %v20 = vpop.permute.xlu0 %19
    %vm21 = vcmask 917312
    %22 = vst.msk [vmem:[#allocation0] sm:$0x1] %vm21, %v20
    %s23 = scalar_lea.vmem %s0, 12
    %v24 = vld [vmem:[%s23] sm:$0x1]
    %25 = vrot.lane.b32.xlu0 %v24, 96
    %v26 = vpop.permute.xlu0 %25
    %vm27 = vcmask 851712
    %28 = vst.msk [vmem:[#allocation0] sm:$0x1] %vm27, %v26
    %s29 = scalar_lea.vmem %s0, 11
    %v30 = vld [vmem:[%s29] sm:$0x1]
    %31 = vrot.lane.b32.xlu0 %v30, 88
    %v32 = vpop.permute.xlu0 %31
    %vm33 = vcmask 786112
    %34 = vst.msk [vmem:[#allocation0] sm:$0x1] %vm33, %v32
    %s35 = scalar_lea.vmem %s0, 10
    %v36 = vld [vmem:[%s35] sm:$0x1]
    %37 = vrot.lane.b32.xlu0 %v36, 80
    %v38 = vpop.permute.xlu0 %37
    %vm39 = vcmask 720512
    %40 = vst.msk [vmem:[#allocation0] sm:$0x1] %vm39, %v38
    %s41 = scalar_lea.vmem %s0, 9
    %v42 = vld [vmem:[%s41] sm:$0x1]
    %43 = vrot.lane.b32.xlu0 %v42, 72
    %v44 = vpop.permute.xlu0 %43
    %vm45 = vcmask 654912
    %46 = vst.msk [vmem:[#allocation0] sm:$0x1] %vm45, %v44
    %s47 = scalar_lea.vmem %s0, 8
    %v48 = vld [vmem:[%s47] sm:$0x1]
    %49 = vrot.lane.b32.xlu0 %v48, 64
    %v50 = vpop.permute.xlu0 %49
    %vm51 = vcmask 589312
    %52 = vst.msk [vmem:[#allocation0] sm:$0x1] %vm51, %v50
    %s53 = scalar_lea.vmem %s0, 7
    %v54 = vld [vmem:[%s53] sm:$0x1]
    %55 = vrot.lane.b32.xlu0 %v54, 56
    %v56 = vpop.permute.xlu0 %55
    %vm57 = vcmask 523712
    %58 = vst.msk [vmem:[#allocation0] sm:$0x1] %vm57, %v56
    %s59 = scalar_lea.vmem %s0, 6
    %v60 = vld [vmem:[%s59] sm:$0x1]
    %61 = vrot.lane.b32.xlu0 %v60, 48
    %v62 = vpop.permute.xlu0 %61
    %vm63 = vcmask 458112
    %64 = vst.msk [vmem:[#allocation0] sm:$0x1] %vm63, %v62
    %s65 = scalar_lea.vmem %s0, 5
    %v66 = vld [vmem:[%s65] sm:$0x1]
    %67 = vrot.lane.b32.xlu0 %v66, 40
    %v68 = vpop.permute.xlu0 %67
    %vm69 = vcmask 392512
    %70 = vst.msk [vmem:[#allocation0] sm:$0x1] %vm69, %v68
    %s71 = scalar_lea.vmem %s0, 4
    %v72 = vld [vmem:[%s71] sm:$0x1]
    %73 = vrot.lane.b32.xlu0 %v72, 32
    %v74 = vpop.permute.xlu0 %73
    %vm75 = vcmask 326912
    %76 = vst.msk [vmem:[#allocation0] sm:$0x1] %vm75, %v74
    %s77 = scalar_lea.vmem %s0, 3
    %v78 = vld [vmem:[%s77] sm:$0x1]
    %79 = vrot.lane.b32.xlu0 %v78, 24
    %v80 = vpop.permute.xlu0 %79
    %vm81 = vcmask 261312
    %82 = vst.msk [vmem:[#allocation0] sm:$0x1] %vm81, %v80
    %s83 = scalar_lea.vmem %s0, 2
    %v84 = vld [vmem:[%s83] sm:$0x1]
    %85 = vrot.lane.b32.xlu0 %v84, 16
    %v86 = vpop.permute.xlu0 %85
    %vm87 = vcmask 195712
    %88 = vst.msk [vmem:[#allocation0] sm:$0x1] %vm87, %v86
    %s89 = scalar_lea.vmem %s0, 1
    %v90 = vld [vmem:[%s89] sm:$0x1]
    %91 = vrot.lane.b32.xlu0 %v90, 8
    %v92 = vpop.permute.xlu0 %91
    %vm93 = vcmask 130112
    %94 = vst.msk [vmem:[#allocation0] sm:$0x1] %vm93, %v92
    %s96 = ssub.s32 2, 1
    %v97 = vld [vmem:[#allocation0] sm:%s96]
    %s99 = ssub.s32 2, 1
    %100 = vst [vmem:[%s1] sm:%s99] %v97

// kernel: double_conv_forward.3
$region0: #{double_conv_forward.3}
  #allocation0 [shape = 'u32[]', space=smem, size = 0x4, offset = 0x4, fixed_abs, tag = 'smem constant byte address 0x4 - core index']
  #allocation1 [shape = 'u32[72,128]{1,0:T(1,128)}', space=vmem, size = 0x9000, scoped, tag = 'internal scratch']
  %s0 = inlined_call_operand.vmem [shape: f32[2,16,64], index: 0, kind: input, shape index: {}]
  %s1 = inlined_call_operand.vmem [shape: bf16[192,128], index: 1, kind: input, shape index: {}]
  %s2 = inlined_call_operand.vmem [shape: bf16[2,16,128], index: 2, kind: output, shape index: {0}]
  %s3 = inlined_call_operand.vmem [shape: f32[2,128], index: 3, kind: output, shape index: {1}]
  %4 = xla_tuple %s2, %s3
  %s5 = sld [smem:[#allocation0]]
  $region26: #{double_conv_forward.3} parent=0
    _
  %s7 = ssub.s32 1, %s5
  %s8 = scalar_select 0, %s7, %s5
  // Predicated region
  $region2: #{double_conv_forward.3} parent=0 // pred_check
    _
  $region3: #{double_conv_forward.3} parent=0 // pred_check_branch
    %10 = sbr.rel (0) target = $region5
  $region4: #{double_conv_forward.3} parent=0 // pred_region
    _
  $region5: #{double_conv_forward.3} parent=0 // pred_fallthru
    _
  // Predicated region
  $region6: #{double_conv_forward.3} parent=0 // pred_check
    _
  $region7: #{double_conv_forward.3} parent=0 // pred_check_branch
    %12 = sbr.rel (0) target = $region9
  $region8: #{double_conv_forward.3} parent=0 // pred_region
    _
  $region9: #{double_conv_forward.3} parent=0 // pred_fallthru
    _
  %v14 = vld [vmem:[%s0] sm:$0xff]
  %v15 = vld [vmem:[%s0 + $0x8] sm:$0xff]
  %v16 = vld [vmem:[%s0 + $0x10] sm:$0xff]
  %v17 = vld [vmem:[%s0 + $0x18] sm:$0xff]
  %v18 = vpack.c.bf16 %v14, %v14
  %v19 = vpack.c.bf16 %v15, %v15
  %v20 = vpack.c.bf16 %v16, %v16
  %v21 = vpack.c.bf16 %v17, %v17
  %v26 = vunpack.c.l.b16 %v18
  %v27 = vunpack.c.l.b16 %v19
  %v28 = vunpack.c.l.b16 %v20
  %v29 = vunpack.c.l.b16 %v21
  %v30 = vpack.c.b16 %v27, %v26
  %v31 = vpack.c.b16 %v29, %v28
  %v33 = vshrl.u32 %v30, 16
  %v35 = vrot.slane %v33, 7
  %v36 = vshll.u32 %v30, 16
  %v38 = vor.u32 %v35, %v36
  %v40 = vshrl.u32 %v31, 16
  %v42 = vrot.slane %v40, 7
  %v43 = vshll.u32 %v31, 16
  %v45 = vor.u32 %v42, %v43
  %vm48 = vcmask 1040384
  %vm49 = vsmask.f32 256
  %vm50 = vmand %vm48, %vm49
  %v51 = vsel %vm50, 0, %v38
  %v52 = vsel %vm50, 0, %v45
  %v53 = vrot.slane %v36, 1
  %v54 = vor.u32 %v33, %v53
  %v55 = vrot.slane %v43, 1
  %v56 = vor.u32 %v40, %v55
  %vm59 = vcmask 1047552
  %vm60 = vsmask.f32 7424
  %vm61 = vmand %vm59, %vm60
  %v62 = vsel %vm61, %v54, 0
  %v63 = vsel %vm61, %v56, 0
  %64 = vrot.lane.b32.xlu0 %v30, 64
  %v65 = vpop.permute.xlu0 %64
  %66 = vrot.lane.b32.xlu0 %v31, 64
  %v67 = vpop.permute.xlu0 %66
  %vm68 = vcmask 523264
  %v71 = vsel %vm68, %v51, %v65
  %v75 = vsel %vm68, %v52, %v67
  %v77 = vld [vmem:[%s1] sm:$0xf]
  %v78 = vld [vmem:[%s1 + $0x4] sm:$0xf]
  %v79 = vld [vmem:[%s1 + $0x8] sm:$0xf]
  %v80 = vld [vmem:[%s1 + $0xc] sm:$0xf]
  %v81 = vld [vmem:[%s1 + $0x10] sm:$0xf]
  %v82 = vld [vmem:[%s1 + $0x14] sm:$0xf]
  %v83 = vld [vmem:[%s1 + $0x18] sm:$0xf]
  %v84 = vld [vmem:[%s1 + $0x1c] sm:$0xf]
  %v85 = vld [vmem:[%s1 + $0x20] sm:$0xf]
  %v86 = vld [vmem:[%s1 + $0x24] sm:$0xf]
  %v87 = vld [vmem:[%s1 + $0x28] sm:$0xf]
  %v88 = vld [vmem:[%s1 + $0x2c] sm:$0xf]
  %v89 = vld [vmem:[%s1 + $0x30] sm:$0xf]
  %v90 = vld [vmem:[%s1 + $0x34] sm:$0xf]
  %v91 = vld [vmem:[%s1 + $0x38] sm:$0xf]
  %v92 = vld [vmem:[%s1 + $0x3c] sm:$0xf]
  %v93 = vld [vmem:[%s1 + $0x40] sm:$0xf]
  %v94 = vld [vmem:[%s1 + $0x44] sm:$0xf]
  %v95 = vld [vmem:[%s1 + $0x48] sm:$0xf]
  %v96 = vld [vmem:[%s1 + $0x4c] sm:$0xf]
  %v97 = vld [vmem:[%s1 + $0x50] sm:$0xf]
  %v98 = vld [vmem:[%s1 + $0x54] sm:$0xf]
  %v99 = vld [vmem:[%s1 + $0x58] sm:$0xf]
  %v100 = vld [vmem:[%s1 + $0x5c] sm:$0xf]
  %v125 = vunpack.c.l.b16 %v77
  %v126 = vunpack.c.l.b16 %v78
  %v127 = vunpack.c.l.b16 %v79
  %v128 = vunpack.c.l.b16 %v80
  %v129 = vunpack.c.l.b16 %v81
  %v130 = vunpack.c.l.b16 %v82
  %v131 = vunpack.c.l.b16 %v83
  %v132 = vunpack.c.l.b16 %v84
  %v133 = vunpack.c.l.b16 %v85
  %v134 = vunpack.c.l.b16 %v86
  %v135 = vunpack.c.l.b16 %v87
  %v136 = vunpack.c.l.b16 %v88
  %v137 = vunpack.c.l.b16 %v89
  %v138 = vunpack.c.l.b16 %v90
  %v139 = vunpack.c.l.b16 %v91
  %v140 = vunpack.c.l.b16 %v92
  %v141 = vunpack.c.l.b16 %v93
  %v142 = vunpack.c.l.b16 %v94
  %v143 = vunpack.c.l.b16 %v95
  %v144 = vunpack.c.l.b16 %v96
  %v145 = vunpack.c.l.b16 %v97
  %v146 = vunpack.c.l.b16 %v98
  %v147 = vunpack.c.l.b16 %v99
  %v148 = vunpack.c.l.b16 %v100
  %v149 = vpack.c.b16 %v126, %v125
  %v150 = vpack.c.b16 %v128, %v127
  %v151 = vpack.c.b16 %v130, %v129
  %v152 = vpack.c.b16 %v132, %v131
  %v153 = vpack.c.b16 %v134, %v133
  %v154 = vpack.c.b16 %v136, %v135
  %v155 = vpack.c.b16 %v138, %v137
  %v156 = vpack.c.b16 %v140, %v139
  %v157 = vpack.c.b16 %v142, %v141
  %v158 = vpack.c.b16 %v144, %v143
  %v159 = vpack.c.b16 %v146, %v145
  %v160 = vpack.c.b16 %v148, %v147
  %v174 = vsel %vm68, %v62, 0
  %v177 = vsel %vm68, %v63, 0
  %179 = vmatpush.bf16.msra.mxu0 %v156
  %180 = vmatpush.bf16.msra.mxu0 %v155
  %181 = vmatpush.bf16.msra.mxu0 %v154
  %182 = vmatpush.bf16.msra.mxu0 %v153
  %183 = vmatpush.bf16.msra.mxu0 %v152
  %184 = vmatpush.bf16.msra.mxu0 %v151
  %185 = vmatpush.bf16.msra.mxu0 %v150
  %186 = vmatpush.bf16.msra.mxu0 %v149
  %187 = vmatmul.bf16.gmra.mxu0 %v71
  %v188 = vpop.f32.mrf.mxu0
  %v189 = vadd.f32 0.0, %v188
  %v190 = vpop.f32.mrf.mxu0
  %v191 = vadd.f32 0.0, %v190
  %192 = vmatmul.bf16.gmra.mxu0 %v75
  %v193 = vpop.f32.mrf.mxu0
  %v194 = vadd.f32 0.0, %v193
  %v195 = vpop.f32.mrf.mxu0
  %v196 = vadd.f32 0.0, %v195
  %197 = vdwg.mxu0
  %198 = vmatpush.bf16.msra.mxu0 0
  %199 = vmatpush.bf16.msra.mxu0 0
  %200 = vmatpush.bf16.msra.mxu0 0
  %201 = vmatpush.bf16.msra.mxu0 0
  %202 = vmatpush.bf16.msra.mxu0 %v160
  %203 = vmatpush.bf16.msra.mxu0 %v159
  %204 = vmatpush.bf16.msra.mxu0 %v158
  %205 = vmatpush.bf16.msra.mxu0 %v157
  %206 = vmatmul.bf16.gmra.mxu0 %v174
  %v207 = vpop.f32.mrf.mxu0
  %v208 = vadd.f32 %v189, %v207
  %v209 = vpop.f32.mrf.mxu0
  %v210 = vadd.f32 %v191, %v209
  %211 = vmatmul.bf16.gmra.mxu0 %v177
  %v212 = vpop.f32.mrf.mxu0
  %v213 = vadd.f32 %v194, %v212
  %v214 = vpop.f32.mrf.mxu0
  %v215 = vadd.f32 %v196, %v214
  %216 = vdwg.mxu0
  %v217 = vpack.c.bf16 %v208, %v208
  %v218 = vpack.c.bf16 %v210, %v210
  %v219 = vpack.c.bf16 %v213, %v213
  %v220 = vpack.c.bf16 %v215, %v215
  %221 = vst [vmem:[%s2] sm:$0xf] %v217
  %222 = vst [vmem:[%s2 + $0x4] sm:$0xf] %v218
  %223 = vst [vmem:[%s2 + $0x8] sm:$0xf] %v219
  %224 = vst [vmem:[%s2 + $0xc] sm:$0xf] %v220
  %v225 = vadd.f32 %v208, %v210
  %v226 = vadd.f32 %v225, %v213
  %v227 = vadd.f32 %v226, %v215
  %v228 = vrot.slane %v227, 4
  %v229 = vadd.f32 %v227, %v228
  %v230 = vrot.slane %v229, 2
  %v231 = vadd.f32 %v229, %v230
  %v232 = vrot.slane %v231, 1
  %v233 = vadd.f32 %v231, %v232
  %234 = vst [vmem:[%s3] sm:$0x1] %v233
  %v235 = vmul.f32 %v208, %v208
  %v236 = vmul.f32 %v210, %v210
  %v237 = vmul.f32 %v213, %v213
  %v238 = vmul.f32 %v215, %v215
  %v239 = vadd.f32 %v235, %v236
  %v240 = vadd.f32 %v239, %v237
  %v241 = vadd.f32 %v240, %v238
  %v242 = vrot.slane %v241, 4
  %v243 = vadd.f32 %v241, %v242
  %v244 = vrot.slane %v243, 2
  %v245 = vadd.f32 %v243, %v244
  %v246 = vrot.slane %v245, 1
  %v247 = vadd.f32 %v245, %v246
  %248 = vst [vmem:[%s3 + $0x1] sm:$0x1] %v247
  // Predicated region
  $region10: #{double_conv_forward.3} parent=0 // pred_check
    _
  $region11: #{double_conv_forward.3} parent=0 // pred_check_branch
    %250 = sbr.rel (0) target = $region13
  $region12: #{double_conv_forward.3} parent=0 // pred_region
    _
  $region13: #{double_conv_forward.3} parent=0 // pred_fallthru
    _
  // Predicated region
  $region14: #{double_conv_forward.3} parent=0 // pred_check
    _
  $region15: #{double_conv_forward.3} parent=0 // pred_check_branch
    %252 = sbr.rel (0) target = $region17
  $region16: #{double_conv_forward.3} parent=0 // pred_region
    _
  $region17: #{double_conv_forward.3} parent=0 // pred_fallthru
    _
  // Predicated region
  $region18: #{double_conv_forward.3} parent=0 // pred_check
    _
  $region19: #{double_conv_forward.3} parent=0 // pred_check_branch
    %254 = sbr.rel (0) target = $region21
  $region20: #{double_conv_forward.3} parent=0 // pred_region
    _
  $region21: #{double_conv_forward.3} parent=0 // pred_fallthru
    _
  // Predicated region
  $region22: #{double_conv_forward.3} parent=0 // pred_check
    _
  $region23: #{double_conv_forward.3} parent=0 // pred_check_branch
    %256 = sbr.rel (0) target = $region25
  $region24: #{double_conv_forward.3} parent=0 // pred_region
    _
  $region25: #{double_conv_forward.3} parent=0 // pred_fallthru
    _

// kernel: double_conv_forward.4
$region0: #{double_conv_forward.4}
  #allocation0 [shape = 'u32[]', space=smem, size = 0x4, offset = 0x4, fixed_abs, tag = 'smem constant byte address 0x4 - core index']
  #allocation1 [shape = 'u32[72,128]{1,0:T(1,128)}', space=vmem, size = 0x9000, scoped, tag = 'internal scratch']
  %s0 = inlined_call_operand.vmem [shape: bf16[2,16,128], index: 0, kind: input, shape index: {}]
  %s1 = inlined_call_operand.vmem [shape: bf16[384,128], index: 1, kind: input, shape index: {}]
  %s2 = inlined_call_operand.vmem [shape: f32[1,1,128], index: 2, kind: input, shape index: {}]
  %s3 = inlined_call_operand.vmem [shape: f32[1,1,128], index: 3, kind: input, shape index: {}]
  %s4 = inlined_call_operand.vmem [shape: bf16[2,16,128], index: 4, kind: output, shape index: {0}]
  %s5 = inlined_call_operand.vmem [shape: f32[2,128], index: 5, kind: output, shape index: {1}]
  %6 = xla_tuple %s4, %s5
  %s7 = sld [smem:[#allocation0]]
  $region34: #{double_conv_forward.4} parent=0
    _
  %s9 = ssub.s32 1, %s7
  %s10 = scalar_select 0, %s9, %s7
  // Predicated region
  $region2: #{double_conv_forward.4} parent=0 // pred_check
    _
  $region3: #{double_conv_forward.4} parent=0 // pred_check_branch
    %12 = sbr.rel (0) target = $region5
  $region4: #{double_conv_forward.4} parent=0 // pred_region
    _
  $region5: #{double_conv_forward.4} parent=0 // pred_fallthru
    _
  // Predicated region
  $region6: #{double_conv_forward.4} parent=0 // pred_check
    _
  $region7: #{double_conv_forward.4} parent=0 // pred_check_branch
    %14 = sbr.rel (0) target = $region9
  $region8: #{double_conv_forward.4} parent=0 // pred_region
    _
  $region9: #{double_conv_forward.4} parent=0 // pred_fallthru
    _
  // Predicated region
  $region10: #{double_conv_forward.4} parent=0 // pred_check
    _
  $region11: #{double_conv_forward.4} parent=0 // pred_check_branch
    %16 = sbr.rel (0) target = $region13
  $region12: #{double_conv_forward.4} parent=0 // pred_region
    _
  $region13: #{double_conv_forward.4} parent=0 // pred_fallthru
    _
  // Predicated region
  $region14: #{double_conv_forward.4} parent=0 // pred_check
    _
  $region15: #{double_conv_forward.4} parent=0 // pred_check_branch
    %18 = sbr.rel (0) target = $region17
  $region16: #{double_conv_forward.4} parent=0 // pred_region
    _
  $region17: #{double_conv_forward.4} parent=0 // pred_fallthru
    _
  %v20 = vld [vmem:[%s0] sm:$0xf]
  %v21 = vld [vmem:[%s0 + $0x4] sm:$0xf]
  %v22 = vld [vmem:[%s0 + $0x8] sm:$0xf]
  %v23 = vld [vmem:[%s0 + $0xc] sm:$0xf]
  %v24 = vunpack.c.l.bf16 %v20
  %v25 = vunpack.c.l.bf16 %v21
  %v26 = vunpack.c.l.bf16 %v22
  %v27 = vunpack.c.l.bf16 %v23
  %v28 = vld [vmem:[%s2] sm:$0x1]
  %v30 = vperm.slane %v28, 0
  %v32 = vmul.f32 %v24, %v30
  %v33 = vmul.f32 %v25, %v30
  %v34 = vmul.f32 %v26, %v30
  %v35 = vmul.f32 %v27, %v30
  %v36 = vld [vmem:[%s3] sm:$0x1]
  %v38 = vperm.slane %v36, 0
  %v40 = vadd.f32 %v32, %v38
  %v41 = vadd.f32 %v33, %v38
  %v42 = vadd.f32 %v34, %v38
  %v43 = vadd.f32 %v35, %v38
  %v44 = vmax.f32 %v40, 0.0
  %v45 = vmax.f32 %v41, 0.0
  %v46 = vmax.f32 %v42, 0.0
  %v47 = vmax.f32 %v43, 0.0
  %v48 = vpack.c.bf16 %v44, %v44
  %v49 = vpack.c.bf16 %v45, %v45
  %v50 = vpack.c.bf16 %v46, %v46
  %v51 = vpack.c.bf16 %v47, %v47
  %v56 = vunpack.c.l.b16 %v48
  %v57 = vunpack.c.l.b16 %v49
  %v58 = vunpack.c.l.b16 %v50
  %v59 = vunpack.c.l.b16 %v51
  %v60 = vpack.c.b16 %v57, %v56
  %v61 = vpack.c.b16 %v59, %v58
  %v63 = vshrl.u32 %v60, 16
  %v65 = vrot.slane %v63, 7
  %v66 = vshll.u32 %v60, 16
  %v68 = vor.u32 %v65, %v66
  %v70 = vshrl.u32 %v61, 16
  %v72 = vrot.slane %v70, 7
  %v73 = vshll.u32 %v61, 16
  %v75 = vor.u32 %v72, %v73
  %vm78 = vcmask 1040384
  %vm79 = vsmask.f32 256
  %vm80 = vmand %vm78, %vm79
  %v81 = vsel %vm80, 0, %v68
  %v82 = vsel %vm80, 0, %v75
  %v83 = vrot.slane %v66, 1
  %v84 = vor.u32 %v63, %v83
  %v85 = vrot.slane %v73, 1
  %v86 = vor.u32 %v70, %v85
  %vm89 = vcmask 1047552
  %vm90 = vsmask.f32 7424
  %vm91 = vmand %vm89, %vm90
  %v92 = vsel %vm91, %v84, 0
  %v93 = vsel %vm91, %v86, 0
  %v96 = vld [vmem:[%s1] sm:$0xf]
  %v97 = vld [vmem:[%s1 + $0x4] sm:$0xf]
  %v98 = vld [vmem:[%s1 + $0x8] sm:$0xf]
  %v99 = vld [vmem:[%s1 + $0xc] sm:$0xf]
  %v100 = vld [vmem:[%s1 + $0x10] sm:$0xf]
  %v101 = vld [vmem:[%s1 + $0x14] sm:$0xf]
  %v102 = vld [vmem:[%s1 + $0x18] sm:$0xf]
  %v103 = vld [vmem:[%s1 + $0x1c] sm:$0xf]
  %v104 = vld [vmem:[%s1 + $0x20] sm:$0xf]
  %v105 = vld [vmem:[%s1 + $0x24] sm:$0xf]
  %v106 = vld [vmem:[%s1 + $0x28] sm:$0xf]
  %v107 = vld [vmem:[%s1 + $0x2c] sm:$0xf]
  %v108 = vld [vmem:[%s1 + $0x30] sm:$0xf]
  %v109 = vld [vmem:[%s1 + $0x34] sm:$0xf]
  %v110 = vld [vmem:[%s1 + $0x38] sm:$0xf]
  %v111 = vld [vmem:[%s1 + $0x3c] sm:$0xf]
  %v112 = vld [vmem:[%s1 + $0x40] sm:$0xf]
  %v113 = vld [vmem:[%s1 + $0x44] sm:$0xf]
  %v114 = vld [vmem:[%s1 + $0x48] sm:$0xf]
  %v115 = vld [vmem:[%s1 + $0x4c] sm:$0xf]
  %v116 = vld [vmem:[%s1 + $0x50] sm:$0xf]
  %v117 = vld [vmem:[%s1 + $0x54] sm:$0xf]
  %v118 = vld [vmem:[%s1 + $0x58] sm:$0xf]
  %v119 = vld [vmem:[%s1 + $0x5c] sm:$0xf]
  %v120 = vld [vmem:[%s1 + $0x60] sm:$0xf]
  %v121 = vld [vmem:[%s1 + $0x64] sm:$0xf]
  %v122 = vld [vmem:[%s1 + $0x68] sm:$0xf]
  %v123 = vld [vmem:[%s1 + $0x6c] sm:$0xf]
  %v124 = vld [vmem:[%s1 + $0x70] sm:$0xf]
  %v125 = vld [vmem:[%s1 + $0x74] sm:$0xf]
  %v126 = vld [vmem:[%s1 + $0x78] sm:$0xf]
  %v127 = vld [vmem:[%s1 + $0x7c] sm:$0xf]
  %v128 = vld [vmem:[%s1 + $0x80] sm:$0xf]
  %v129 = vld [vmem:[%s1 + $0x84] sm:$0xf]
  %v130 = vld [vmem:[%s1 + $0x88] sm:$0xf]
  %v131 = vld [vmem:[%s1 + $0x8c] sm:$0xf]
  %v132 = vld [vmem:[%s1 + $0x90] sm:$0xf]
  %v133 = vld [vmem:[%s1 + $0x94] sm:$0xf]
  %v134 = vld [vmem:[%s1 + $0x98] sm:$0xf]
  %v135 = vld [vmem:[%s1 + $0x9c] sm:$0xf]
  %v136 = vld [vmem:[%s1 + $0xa0] sm:$0xf]
  %v137 = vld [vmem:[%s1 + $0xa4] sm:$0xf]
  %v138 = vld [vmem:[%s1 + $0xa8] sm:$0xf]
  %v139 = vld [vmem:[%s1 + $0xac] sm:$0xf]
  %v140 = vld [vmem:[%s1 + $0xb0] sm:$0xf]
  %v141 = vld [vmem:[%s1 + $0xb4] sm:$0xf]
  %v142 = vld [vmem:[%s1 + $0xb8] sm:$0xf]
  %v143 = vld [vmem:[%s1 + $0xbc] sm:$0xf]
  %v192 = vunpack.c.l.b16 %v96
  %v193 = vunpack.c.l.b16 %v97
  %v194 = vunpack.c.l.b16 %v98
  %v195 = vunpack.c.l.b16 %v99
  %v196 = vunpack.c.l.b16 %v100
  %v197 = vunpack.c.l.b16 %v101
  %v198 = vunpack.c.l.b16 %v102
  %v199 = vunpack.c.l.b16 %v103
  %v200 = vunpack.c.l.b16 %v104
  %v201 = vunpack.c.l.b16 %v105
  %v202 = vunpack.c.l.b16 %v106
  %v203 = vunpack.c.l.b16 %v107
  %v204 = vunpack.c.l.b16 %v108
  %v205 = vunpack.c.l.b16 %v109
  %v206 = vunpack.c.l.b16 %v110
  %v207 = vunpack.c.l.b16 %v111
  %v208 = vunpack.c.l.b16 %v112
  %v209 = vunpack.c.l.b16 %v113
  %v210 = vunpack.c.l.b16 %v114
  %v211 = vunpack.c.l.b16 %v115
  %v212 = vunpack.c.l.b16 %v116
  %v213 = vunpack.c.l.b16 %v117
  %v214 = vunpack.c.l.b16 %v118
  %v215 = vunpack.c.l.b16 %v119
  %v216 = vunpack.c.l.b16 %v120
  %v217 = vunpack.c.l.b16 %v121
  %v218 = vunpack.c.l.b16 %v122
  %v219 = vunpack.c.l.b16 %v123
  %v220 = vunpack.c.l.b16 %v124
  %v221 = vunpack.c.l.b16 %v125
  %v222 = vunpack.c.l.b16 %v126
  %v223 = vunpack.c.l.b16 %v127
  %v224 = vunpack.c.l.b16 %v128
  %v225 = vunpack.c.l.b16 %v129
  %v226 = vunpack.c.l.b16 %v130
  %v227 = vunpack.c.l.b16 %v131
  %v228 = vunpack.c.l.b16 %v132
  %v229 = vunpack.c.l.b16 %v133
  %v230 = vunpack.c.l.b16 %v134
  %v231 = vunpack.c.l.b16 %v135
  %v232 = vunpack.c.l.b16 %v136
  %v233 = vunpack.c.l.b16 %v137
  %v234 = vunpack.c.l.b16 %v138
  %v235 = vunpack.c.l.b16 %v139
  %v236 = vunpack.c.l.b16 %v140
  %v237 = vunpack.c.l.b16 %v141
  %v238 = vunpack.c.l.b16 %v142
  %v239 = vunpack.c.l.b16 %v143
  %v240 = vpack.c.b16 %v193, %v192
  %v241 = vpack.c.b16 %v195, %v194
  %v242 = vpack.c.b16 %v197, %v196
  %v243 = vpack.c.b16 %v199, %v198
  %v244 = vpack.c.b16 %v201, %v200
  %v245 = vpack.c.b16 %v203, %v202
  %v246 = vpack.c.b16 %v205, %v204
  %v247 = vpack.c.b16 %v207, %v206
  %v248 = vpack.c.b16 %v209, %v208
  %v249 = vpack.c.b16 %v211, %v210
  %v250 = vpack.c.b16 %v213, %v212
  %v251 = vpack.c.b16 %v215, %v214
  %v252 = vpack.c.b16 %v217, %v216
  %v253 = vpack.c.b16 %v219, %v218
  %v254 = vpack.c.b16 %v221, %v220
  %v255 = vpack.c.b16 %v223, %v222
  %v256 = vpack.c.b16 %v225, %v224
  %v257 = vpack.c.b16 %v227, %v226
  %v258 = vpack.c.b16 %v229, %v228
  %v259 = vpack.c.b16 %v231, %v230
  %v260 = vpack.c.b16 %v233, %v232
  %v261 = vpack.c.b16 %v235, %v234
  %v262 = vpack.c.b16 %v237, %v236
  %v263 = vpack.c.b16 %v239, %v238
  %288 = vmatpush.bf16.msra.mxu0 %v247
  %289 = vmatpush.bf16.msra.mxu0 %v246
  %290 = vmatpush.bf16.msra.mxu0 %v245
  %291 = vmatpush.bf16.msra.mxu0 %v244
  %292 = vmatpush.bf16.msra.mxu0 %v243
  %293 = vmatpush.bf16.msra.mxu0 %v242
  %294 = vmatpush.bf16.msra.mxu0 %v241
  %295 = vmatpush.bf16.msra.mxu0 %v240
  %296 = vmatmul.bf16.gmra.mxu0 %v81
  %v297 = vpop.f32.mrf.mxu0
  %v298 = vadd.f32 0.0, %v297
  %v299 = vpop.f32.mrf.mxu0
  %v300 = vadd.f32 0.0, %v299
  %301 = vmatmul.bf16.gmra.mxu0 %v82
  %v302 = vpop.f32.mrf.mxu0
  %v303 = vadd.f32 0.0, %v302
  %v304 = vpop.f32.mrf.mxu0
  %v305 = vadd.f32 0.0, %v304
  %306 = vdwg.mxu0
  %307 = vmatpush.bf16.msra.mxu0 %v255
  %308 = vmatpush.bf16.msra.mxu0 %v254
  %309 = vmatpush.bf16.msra.mxu0 %v253
  %310 = vmatpush.bf16.msra.mxu0 %v252
  %311 = vmatpush.bf16.msra.mxu0 %v251
  %312 = vmatpush.bf16.msra.mxu0 %v250
  %313 = vmatpush.bf16.msra.mxu0 %v249
  %314 = vmatpush.bf16.msra.mxu0 %v248
  %315 = vmatmul.bf16.gmra.mxu0 %v60
  %v316 = vpop.f32.mrf.mxu0
  %v317 = vadd.f32 %v298, %v316
  %v318 = vpop.f32.mrf.mxu0
  %v319 = vadd.f32 %v300, %v318
  %320 = vmatmul.bf16.gmra.mxu0 %v61
  %v321 = vpop.f32.mrf.mxu0
  %v322 = vadd.f32 %v303, %v321
  %v323 = vpop.f32.mrf.mxu0
  %v324 = vadd.f32 %v305, %v323
  %325 = vdwg.mxu0
  %326 = vmatpush.bf16.msra.mxu0 %v263
  %327 = vmatpush.bf16.msra.mxu0 %v262
  %328 = vmatpush.bf16.msra.mxu0 %v261
  %329 = vmatpush.bf16.msra.mxu0 %v260
  %330 = vmatpush.bf16.msra.mxu0 %v259
  %331 = vmatpush.bf16.msra.mxu0 %v258
  %332 = vmatpush.bf16.msra.mxu0 %v257
  %333 = vmatpush.bf16.msra.mxu0 %v256
  %334 = vmatmul.bf16.gmra.mxu0 %v92
  %v335 = vpop.f32.mrf.mxu0
  %v336 = vadd.f32 %v317, %v335
  %v337 = vpop.f32.mrf.mxu0
  %v338 = vadd.f32 %v319, %v337
  %339 = vmatmul.bf16.gmra.mxu0 %v93
  %v340 = vpop.f32.mrf.mxu0
  %v341 = vadd.f32 %v322, %v340
  %v342 = vpop.f32.mrf.mxu0
  %v343 = vadd.f32 %v324, %v342
  %344 = vdwg.mxu0
  %v345 = vpack.c.bf16 %v336, %v336
  %v346 = vpack.c.bf16 %v338, %v338
  %v347 = vpack.c.bf16 %v341, %v341
  %v348 = vpack.c.bf16 %v343, %v343
  %349 = vst [vmem:[%s4] sm:$0xf] %v345
  %350 = vst [vmem:[%s4 + $0x4] sm:$0xf] %v346
  %351 = vst [vmem:[%s4 + $0x8] sm:$0xf] %v347
  %352 = vst [vmem:[%s4 + $0xc] sm:$0xf] %v348
  %v353 = vadd.f32 %v336, %v338
  %v354 = vadd.f32 %v353, %v341
  %v355 = vadd.f32 %v354, %v343
  %v356 = vrot.slane %v355, 4
  %v357 = vadd.f32 %v355, %v356
  %v358 = vrot.slane %v357, 2
  %v359 = vadd.f32 %v357, %v358
  %v360 = vrot.slane %v359, 1
  %v361 = vadd.f32 %v359, %v360
  %362 = vst [vmem:[%s5] sm:$0x1] %v361
  %v363 = vmul.f32 %v336, %v336
  %v364 = vmul.f32 %v338, %v338
  %v365 = vmul.f32 %v341, %v341
  %v366 = vmul.f32 %v343, %v343
  %v367 = vadd.f32 %v363, %v364
  %v368 = vadd.f32 %v367, %v365
  %v369 = vadd.f32 %v368, %v366
  %v370 = vrot.slane %v369, 4
  %v371 = vadd.f32 %v369, %v370
  %v372 = vrot.slane %v371, 2
  %v373 = vadd.f32 %v371, %v372
  %v374 = vrot.slane %v373, 1
  %v375 = vadd.f32 %v373, %v374
  %376 = vst [vmem:[%s5 + $0x1] sm:$0x1] %v375
  // Predicated region
  $region18: #{double_conv_forward.4} parent=0 // pred_check
    _
  $region19: #{double_conv_forward.4} parent=0 // pred_check_branch
    %378 = sbr.rel (0) target = $region21
  $region20: #{double_conv_forward.4} parent=0 // pred_region
    _
  $region21: #{double_conv_forward.4} parent=0 // pred_fallthru
    _
  // Predicated region
  $region22: #{double_conv_forward.4} parent=0 // pred_check
    _
  $region23: #{double_conv_forward.4} parent=0 // pred_check_branch
    %380 = sbr.rel (0) target = $region25
  $region24: #{double_conv_forward.4} parent=0 // pred_region
    _
  $region25: #{double_conv_forward.4} parent=0 // pred_fallthru
    _
  // Predicated region
  $region26: #{double_conv_forward.4} parent=0 // pred_check
    _
  $region27: #{double_conv_forward.4} parent=0 // pred_check_branch
    %382 = sbr.rel (0) target = $region29
  $region28: #{double_conv_forward.4} parent=0 // pred_region
    _
  $region29: #{double_conv_forward.4} parent=0 // pred_fallthru
    _
  // Predicated region
  $region30: #{double_conv_forward.4} parent=0 // pred_check
    _
  $region31: #{double_conv_forward.4} parent=0 // pred_check_branch
    %384 = sbr.rel (0) target = $region33
  $region32: #{double_conv_forward.4} parent=0 // pred_region
    _
  $region33: #{double_conv_forward.4} parent=0 // pred_fallthru
    _

// kernel: double_conv_forward.5
$region0: #{double_conv_forward.5}
  #allocation0 [shape = 'u32[]', space=smem, size = 0x4, offset = 0x4, fixed_abs, tag = 'smem constant byte address 0x4 - core index']
  #allocation1 [shape = 'u32[72,128]{1,0:T(1,128)}', space=vmem, size = 0x9000, scoped, tag = 'internal scratch']
  %s0 = inlined_call_operand.vmem [shape: bf16[2,16,128], index: 0, kind: input, shape index: {}]
  %s1 = inlined_call_operand.vmem [shape: f32[1,1,128], index: 1, kind: input, shape index: {}]
  %s2 = inlined_call_operand.vmem [shape: f32[1,1,128], index: 2, kind: input, shape index: {}]
  %s3 = inlined_call_operand.vmem [shape: f32[2,16,128], index: 3, kind: output, shape index: {}]
  %s4 = sld [smem:[#allocation0]]
  $region22: #{double_conv_forward.5} parent=0
    _
  %s6 = ssub.s32 1, %s4
  %s7 = scalar_select 0, %s6, %s4
  // Predicated region
  $region2: #{double_conv_forward.5} parent=0 // pred_check
    _
  $region3: #{double_conv_forward.5} parent=0 // pred_check_branch
    %9 = sbr.rel (0) target = $region5
  $region4: #{double_conv_forward.5} parent=0 // pred_region
    _
  $region5: #{double_conv_forward.5} parent=0 // pred_fallthru
    _
  // Predicated region
  $region6: #{double_conv_forward.5} parent=0 // pred_check
    _
  $region7: #{double_conv_forward.5} parent=0 // pred_check_branch
    %11 = sbr.rel (0) target = $region9
  $region8: #{double_conv_forward.5} parent=0 // pred_region
    _
  $region9: #{double_conv_forward.5} parent=0 // pred_fallthru
    _
  // Predicated region
  $region10: #{double_conv_forward.5} parent=0 // pred_check
    _
  $region11: #{double_conv_forward.5} parent=0 // pred_check_branch
    %13 = sbr.rel (0) target = $region13
  $region12: #{double_conv_forward.5} parent=0 // pred_region
    _
  $region13: #{double_conv_forward.5} parent=0 // pred_fallthru
    _
  %v14 = vld [vmem:[%s0] sm:$0xf]
  %v15 = vld [vmem:[%s0 + $0x4] sm:$0xf]
  %v16 = vld [vmem:[%s0 + $0x8] sm:$0xf]
  %v17 = vld [vmem:[%s0 + $0xc] sm:$0xf]
  %v18 = vunpack.c.l.bf16 %v14
  %v19 = vunpack.c.l.bf16 %v15
  %v20 = vunpack.c.l.bf16 %v16
  %v21 = vunpack.c.l.bf16 %v17
  %v22 = vld [vmem:[%s1] sm:$0x1]
  %v24 = vperm.slane %v22, 0
  %v26 = vmul.f32 %v18, %v24
  %v27 = vmul.f32 %v19, %v24
  %v28 = vmul.f32 %v20, %v24
  %v29 = vmul.f32 %v21, %v24
  %v30 = vld [vmem:[%s2] sm:$0x1]
  %v32 = vperm.slane %v30, 0
  %v34 = vadd.f32 %v26, %v32
  %v35 = vadd.f32 %v27, %v32
  %v36 = vadd.f32 %v28, %v32
  %v37 = vadd.f32 %v29, %v32
  %v38 = vmax.f32 %v34, 0.0
  %v39 = vmax.f32 %v35, 0.0
  %v40 = vmax.f32 %v36, 0.0
  %v41 = vmax.f32 %v37, 0.0
  %42 = vst [vmem:[%s3] sm:$0xff] %v38
  %43 = vst [vmem:[%s3 + $0x8] sm:$0xff] %v39
  %44 = vst [vmem:[%s3 + $0x10] sm:$0xff] %v40
  %45 = vst [vmem:[%s3 + $0x18] sm:$0xff] %v41
  // Predicated region
  $region14: #{double_conv_forward.5} parent=0 // pred_check
    _
  $region15: #{double_conv_forward.5} parent=0 // pred_check_branch
    %47 = sbr.rel (0) target = $region17
  $region16: #{double_conv_forward.5} parent=0 // pred_region
    _
  $region17: #{double_conv_forward.5} parent=0 // pred_fallthru
    _
  // Predicated region
  $region18: #{double_conv_forward.5} parent=0 // pred_check
    _
  $region19: #{double_conv_forward.5} parent=0 // pred_check_branch
    %49 = sbr.rel (0) target = $region21
  $region20: #{double_conv_forward.5} parent=0 // pred_region
    _
  $region21: #{double_conv_forward.5} parent=0 // pred_fallthru
    _

</llo_original>
